<compile_context>
chip_gen: v5e
topology: v5e:2x2
jax: 0.10.0
libtpu: 0.0.40
codegen_flags: <defaults>
</compile_context>

<pallas_src>
import functools

import jax
import jax.numpy as jnp
from jax.experimental import pallas as pl
from jax.experimental.pallas import tpu as pltpu


def _round_up(x, m):
    return ((x + m - 1) // m) * m


def _downstream_kernel(h_ref, w_ref, out_ref, *, t, r):
    # h_ref: (TB, D_pad)   w_ref: (D_pad, N_pad)   out_ref: (TB, N_pad)
    h = h_ref[...]
    w = w_ref[...]

    # One fused GEMM on the MXU: columns [0, t) are classification logits,
    # columns [t, t + r) are rank logits, the rest is zero padding.
    fused = jnp.dot(h, w, preferred_element_type=jnp.float32)  # (TB, N_pad) f32

    # Lane mask selecting the rank-logit columns; masked softmax keeps a single
    # lane-dense full-width store.
    col = jax.lax.broadcasted_iota(jnp.int32, fused.shape, dimension=1)
    rank_mask = (col >= t) & (col < t + r)

    neg_inf = jnp.float32(-jnp.inf)
    masked = jnp.where(rank_mask, fused, neg_inf)
    m = jnp.max(masked, axis=-1, keepdims=True)
    e = jnp.exp(masked - m)                       # -inf lanes -> 0, no extra select
    denom = jnp.sum(e, axis=-1, keepdims=True)
    attn = e / denom                              # exact normalization

    # Single full-width store: rank lanes carry the softmax, other lanes carry
    # the raw fused result (classification logits + zero padding).
    out_ref[...] = jnp.where(rank_mask, attn, fused)


def prepare_fused_weights(theta_classification, theta_rank):
    """Build the fused, padded weight once (init time), not per forward call.

    Returns (w_fused (D_pad, N_pad), t, r, d).
    """
    d, t = theta_classification.shape
    d2, r = theta_rank.shape
    assert d == d2, "theta_classification / theta_rank fan_in mismatch"
    assert r >= 1, "softmax over an empty rank slab is undefined"

    d_pad = max(128, _round_up(d, 128))          # full-lane K tile
    n_pad = max(128, _round_up(t + r, 128))      # lane-dense output width

    w = jnp.concatenate([theta_classification, theta_rank], axis=1)
    w = jnp.pad(w, ((0, d_pad - d), (0, n_pad - (t + r))))
    return w, t, r, d


def downstream_forward_batched(hidden_states, w_fused, t, r, *, tb=None):
    """Batched Pallas forward.

    hidden_states: (B, D) rows; w_fused: output of prepare_fused_weights.
    Returns (predictions (B, T), attention (B, R)).
    """
    B, d = hidden_states.shape
    d_pad, n_pad = w_fused.shape
    assert d <= d_pad

    # Batch tile: 256 matches the v6e/v7x 2x256^2 MXU geometry (128 on v5e);
    # for tiny batches just round the batch to a sublane multiple.
    if tb is None:
        tb = 256 if B >= 256 else max(8, _round_up(B, 8))
    b_pad = _round_up(B, tb)
    grid = (b_pad // tb,)

    h = jnp.pad(hidden_states, ((0, b_pad - B), (0, d_pad - d)))

    h_itemsize = jnp.dtype(h.dtype).itemsize
    w_itemsize = jnp.dtype(w_fused.dtype).itemsize
    cost = pl.CostEstimate(
        flops=2 * b_pad * d_pad * n_pad,
        transcendentals=b_pad * n_pad,
        bytes_accessed=(b_pad * d_pad * h_itemsize
                        + d_pad * n_pad * w_itemsize
                        + b_pad * n_pad * 4),
    )

    out = pl.pallas_call(
        functools.partial(_downstream_kernel, t=t, r=r),
        out_shape=jax.ShapeDtypeStruct((b_pad, n_pad), jnp.float32),
        grid_spec=pltpu.PrefetchScalarGridSpec(
            num_scalar_prefetch=0,
            grid=grid,
            in_specs=[
                pl.BlockSpec((tb, d_pad), lambda i: (i, 0)),   # batch-tiled rows
                pl.BlockSpec((d_pad, n_pad), lambda i: (0, 0)),  # W resident in VMEM
            ],
            out_specs=pl.BlockSpec((tb, n_pad), lambda i: (i, 0)),
        ),
        compiler_params=pltpu.CompilerParams(
            dimension_semantics=("parallel",)),  # shards batch blocks across TCs
        cost_estimate=cost,
    )(h, w_fused)

    predictions = out[:B, :t]
    attention = out[:B, t:t + r]
    return predictions, attention


def downstream_forward(hidden_state, w_fused, t, r):
    """Module-equivalent forward: hidden_state.view(1, -1) @ [theta_cls | theta_rank]."""
    h = hidden_state.reshape(1, -1)
    return downstream_forward_batched(h, w_fused, t, r)


def xavier_normal(key, shape):
    # torch.nn.init.xavier_normal_: std = sqrt(2 / (fan_in + fan_out))
    fan_in, fan_out = shape
    std = (2.0 / (fan_in + fan_out)) ** 0.5
    return std * jax.random.normal(key, shape, dtype=jnp.float32)


if __name__ == "__main__":
    # Shapes implied by the module:
    #   args.combined_dimensions = 32, target_number = 4, len(identifiers) = 8
    combined_dimensions = 32
    target_number = 4
    num_identifiers = 8

    key = jax.random.PRNGKey(0)
    k_h, k_c, k_r, k_b = jax.random.split(key, 4)

    theta_classification = xavier_normal(k_c, (combined_dimensions, target_number))
    theta_rank = xavier_normal(k_r, (combined_dimensions, num_identifiers))

    # Init-time (hoisted) weight preparation -- done once, reused every call.
    w_fused, t, r, d = prepare_fused_weights(theta_classification, theta_rank)

    # --- single-example path (matches torch module semantics) ---
    hidden_state = jax.random.normal(k_h, (4, 8), dtype=jnp.float32)  # 4*8 = 32
    predictions, attention = downstream_forward(hidden_state, w_fused, t, r)
    jax.block_until_ready((predictions, attention))

    h1 = hidden_state.reshape(1, -1)
    ref_pred = h1 @ theta_classification
    ref_attn = jax.nn.softmax(h1 @ theta_rank, axis=1)
    assert predictions.shape == (1, target_number)
    assert attention.shape == (1, num_identifiers)
    assert jnp.allclose(predictions, ref_pred, atol=1e-5)
    assert jnp.allclose(attention, ref_attn, atol=1e-5)
    assert jnp.allclose(jnp.sum(attention), 1.0, atol=1e-5)

    # --- batched path (amortizes launch overhead / fills MXU rows) ---
    B = 16
    hb = jax.random.normal(k_b, (B, combined_dimensions), dtype=jnp.float32)
    pred_b, attn_b = downstream_forward_batched(hb, w_fused, t, r)
    jax.block_until_ready((pred_b, attn_b))

    ref_pred_b = hb @ theta_classification
    ref_attn_b = jax.nn.softmax(hb @ theta_rank, axis=1)
    assert pred_b.shape == (B, target_number)
    assert attn_b.shape == (B, num_identifiers)
    assert jnp.allclose(pred_b, ref_pred_b, atol=1e-5)
    assert jnp.allclose(attn_b, ref_attn_b, atol=1e-5)
    assert jnp.allclose(jnp.sum(attn_b, axis=1), jnp.ones((B,)), atol=1e-5)

    print("KERNEL_OK")
</pallas_src>

<mosaic_0001>
module attributes {stable_mosaic.version = 11 : i64} {
  func.func @_downstream_kernel(%arg0: i32, %arg1: memref<8x128xf32, #tpu.memory_space<vmem>>, %arg2: memref<128x128xf32, #tpu.memory_space<vmem>>, %arg3: memref<8x128xf32, #tpu.memory_space<vmem>>) attributes {dimension_semantics = [#tpu.dimension_semantics<parallel>], iteration_bounds = array<i64: 1>, scalar_prefetch = 0 : i64, scratch_operands = 0 : i64, tpu.core_type = #tpu.core_type<tc>, window_params = [{transform_indices = @transform_0, window_bounds = array<i64: 8, 128>}, {pipeline_mode = #tpu.pipeline_mode<synchronous>, transform_indices = @transform_1, window_bounds = array<i64: 128, 128>}, {transform_indices = @transform_2, window_bounds = array<i64: 8, 128>}]} {
    %c0 = arith.constant 0 : index
    %c0_0 = arith.constant 0 : index
    %0 = vector.load %arg1[%c0, %c0_0] : memref<8x128xf32, #tpu.memory_space<vmem>>, vector<8x128xf32>
    %c0_1 = arith.constant 0 : index
    %c0_2 = arith.constant 0 : index
    %1 = vector.load %arg2[%c0_1, %c0_2] : memref<128x128xf32, #tpu.memory_space<vmem>>, vector<128x128xf32>
    %cst = arith.constant dense<0.000000e+00> : vector<8x128xf32>
    %2 = tpu.matmul %0, %1, %cst {dimension_numbers = #tpu.dot_dimension_numbers<[1], [0], [0], [1], [0, 0, 1, 1], [], []>} : vector<8x128xf32>, vector<128x128xf32>, vector<8x128xf32> -> vector<8x128xf32>
    %3 = tpu.iota {dimensions = array<i32: 1>} : vector<8x128xi32>
    %c4_i32 = arith.constant 4 : i32
    %4 = vector.broadcast %c4_i32 : i32 to vector<8x128xi32>
    %5 = arith.cmpi sge, %3, %4 : vector<8x128xi32>
    %c12_i32 = arith.constant 12 : i32
    %6 = vector.broadcast %c12_i32 : i32 to vector<8x128xi32>
    %7 = arith.cmpi slt, %3, %6 : vector<8x128xi32>
    %8 = arith.andi %5, %7 : vector<8x128xi1>
    %cst_3 = arith.constant 0xFF800000 : f32
    %9 = vector.broadcast %cst_3 : f32 to vector<8x128xf32>
    %10 = arith.select %8, %2, %9 : vector<8x128xi1>, vector<8x128xf32>
    %cst_4 = arith.constant dense<0xFF800000> : vector<8xf32>
    %11 = vector.multi_reduction <maximumf>, %10, %cst_4 [1] : vector<8x128xf32> to vector<8xf32>
    %12 = vector.shape_cast %11 : vector<8xf32> to vector<8x1xf32>
    %13 = vector.broadcast %12 : vector<8x1xf32> to vector<8x128xf32>
    %14 = arith.subf %10, %13 : vector<8x128xf32>
    %15 = math.exp %14 : vector<8x128xf32>
    %cst_5 = arith.constant dense<0.000000e+00> : vector<8xf32>
    %16 = vector.multi_reduction <add>, %15, %cst_5 [1] : vector<8x128xf32> to vector<8xf32>
    %17 = vector.shape_cast %16 : vector<8xf32> to vector<8x1xf32>
    %18 = vector.broadcast %17 : vector<8x1xf32> to vector<8x128xf32>
    %19 = arith.divf %15, %18 : vector<8x128xf32>
    %20 = arith.select %8, %19, %2 : vector<8x128xi1>, vector<8x128xf32>
    %c0_6 = arith.constant 0 : index
    %c0_7 = arith.constant 0 : index
    %21 = vector.load %arg3[%c0_6, %c0_7] : memref<8x128xf32, #tpu.memory_space<vmem>>, vector<8x128xf32>
    tpu.vector_store %arg3[%c0_6, %c0_7], %20 {strides = array<i32>} : memref<8x128xf32, #tpu.memory_space<vmem>>, vector<8x128xf32>,
    return
  }
  func.func @transform_0(%arg0: i32) -> (i32, i32) {
    %c0_i32 = arith.constant 0 : i32
    %c0_i32_0 = arith.constant 0 : i32
    return %arg0, %c0_i32 : i32, i32
  }
  func.func @transform_1(%arg0: i32) -> (i32, i32) {
    %c0_i32 = arith.constant 0 : i32
    %c0_i32_0 = arith.constant 0 : i32
    %c0_i32_1 = arith.constant 0 : i32
    return %c0_i32, %c0_i32_0 : i32, i32
  }
  func.func @transform_2(%arg0: i32) -> (i32, i32) {
    %c0_i32 = arith.constant 0 : i32
    %c0_i32_0 = arith.constant 0 : i32
    return %arg0, %c0_i32 : i32, i32
  }
}

</mosaic_0001>

<llo_original>
// kernel: tpu_custom_call.1
$region0: #{tpu_custom_call.1}
  #allocation0 [shape = 'u32[]', space=smem, size = 0x4, offset = 0x4, fixed_abs, tag = 'smem constant byte address 0x4 - core index']
  #allocation1 [shape = 'u32[72,128]{1,0:T(1,128)}', space=vmem, size = 0x9000, scoped, tag = 'internal scratch']
  %s0 = inlined_call_operand.hbm [shape: f32[8,128], index: 0, kind: input, shape index: {}]
  %s1 = inlined_call_operand.hbm [shape: f32[128,128], index: 1, kind: input, shape index: {}]
  %s2 = inlined_call_operand.hbm [shape: f32[8,128], index: 2, kind: output, shape index: {}]
  %s3 = sld [smem:[#allocation0]]
  $region26: #{tpu_custom_call.1} parent=0
    _
  %s5 = ssub.s32 1, %s3
  %s6 = scalar_select 0, %s5, %s3
  $region1: #{tpu_custom_call.1} parent=0
    #allocation2 [shape = 'u8[4096]{0}', space=vmem, size = 0x1000, scoped, tag = 'input window, operand 0, single buffered']
    #allocation3 [shape = 's32[1]{0}', space=sflag, size = 0x4, scoped, tag = 'scoped memory for tpu_custom_call.1']
    #allocation4 [shape = 's32[1]{0}', space=sflag, size = 0x4, scoped, tag = 'scoped memory for tpu_custom_call.1']
    #allocation5 [shape = 'u8[65536]{0}', space=vmem, size = 0x10000, scoped, tag = 'input window, operand 1, single buffered']
    #allocation6 [shape = 's32[1]{0}', space=sflag, size = 0x4, scoped, tag = 'scoped memory for tpu_custom_call.1']
    #allocation7 [shape = 'u8[4096]{0}', space=vmem, size = 0x1000, scoped, tag = 'output window, operand 0, single buffered']
    %7 = vsyncpa [#allocation3], 0
    %8 = vsyncpa [#allocation6], 0
    %9 = vsyncpa [#allocation4], 0
    // Predicated region
    $region2: #{tpu_custom_call.1} parent=1 // pred_check
      _
    $region3: #{tpu_custom_call.1} parent=1 // pred_check_branch
      %11 = sbr.rel (0) target = $region5
    $region4: #{tpu_custom_call.1} parent=1 // pred_region
      %13 = vsyncadd [#allocation3], 0
      %s15 = sshll.u32 %s0, 4
      %s16 = int_to_ptr.hbm [resolvable:$true] %s15
      %s17 = sshll.u32 [#allocation2], 4
      %s18 = int_to_ptr.vmem [resolvable:$true] %s17
      %20 = dma.hbm_to_vmem [thread:$0]  %s16, 128, %s18, [#allocation3]
    $region5: #{tpu_custom_call.1} parent=1 // pred_fallthru
      _
    // Predicated region
    $region6: #{tpu_custom_call.1} parent=1 // pred_check
      _
    $region7: #{tpu_custom_call.1} parent=1 // pred_check_branch
      %22 = sbr.rel (0) target = $region9
    $region8: #{tpu_custom_call.1} parent=1 // pred_region
      %24 = vsyncadd [#allocation6], 0
      %s25 = sshll.u32 %s1, 4
      %s26 = int_to_ptr.hbm [resolvable:$true] %s25
      %s27 = sshll.u32 [#allocation5], 4
      %s28 = int_to_ptr.vmem [resolvable:$true] %s27
      %33 = dma.hbm_to_vmem [thread:$0]  %s26, 2048, %s28, [#allocation6], 128, 128, 8
    $region9: #{tpu_custom_call.1} parent=1 // pred_fallthru
      _
    // Predicated region
    $region10: #{tpu_custom_call.1} parent=1 // pred_check
      _
    $region11: #{tpu_custom_call.1} parent=1 // pred_check_branch
      %35 = sbr.rel (0) target = $region13
    $region12: #{tpu_custom_call.1} parent=1 // pred_region
      %37 = dma.done [#allocation3], 128
    $region13: #{tpu_custom_call.1} parent=1 // pred_fallthru
      _
    // Predicated region
    $region14: #{tpu_custom_call.1} parent=1 // pred_check
      _
    $region15: #{tpu_custom_call.1} parent=1 // pred_check_branch
      %39 = sbr.rel (0) target = $region17
    $region16: #{tpu_custom_call.1} parent=1 // pred_region
      %41 = dma.done [#allocation6], 2048
    $region17: #{tpu_custom_call.1} parent=1 // pred_fallthru
      _
    %v42 = vld [vmem:[#allocation2] sm:$0xff]
    %v43 = vld [vmem:[#allocation5] sm:$0xff]
    %v44 = vld [vmem:[#allocation5 + $0x8] sm:$0xff]
    %v45 = vld [vmem:[#allocation5 + $0x10] sm:$0xff]
    %v46 = vld [vmem:[#allocation5 + $0x18] sm:$0xff]
    %v47 = vld [vmem:[#allocation5 + $0x20] sm:$0xff]
    %v48 = vld [vmem:[#allocation5 + $0x28] sm:$0xff]
    %v49 = vld [vmem:[#allocation5 + $0x30] sm:$0xff]
    %v50 = vld [vmem:[#allocation5 + $0x38] sm:$0xff]
    %v51 = vld [vmem:[#allocation5 + $0x40] sm:$0xff]
    %v52 = vld [vmem:[#allocation5 + $0x48] sm:$0xff]
    %v53 = vld [vmem:[#allocation5 + $0x50] sm:$0xff]
    %v54 = vld [vmem:[#allocation5 + $0x58] sm:$0xff]
    %v55 = vld [vmem:[#allocation5 + $0x60] sm:$0xff]
    %v56 = vld [vmem:[#allocation5 + $0x68] sm:$0xff]
    %v57 = vld [vmem:[#allocation5 + $0x70] sm:$0xff]
    %v58 = vld [vmem:[#allocation5 + $0x78] sm:$0xff]
    %59 = vmatpush.msra.mxu0 %v58
    %60 = vmatpush.msra.mxu0 %v57
    %61 = vmatpush.msra.mxu0 %v56
    %62 = vmatpush.msra.mxu0 %v55
    %63 = vmatpush.msra.mxu0 %v54
    %64 = vmatpush.msra.mxu0 %v53
    %65 = vmatpush.msra.mxu0 %v52
    %66 = vmatpush.msra.mxu0 %v51
    %67 = vmatpush.msra.mxu0 %v50
    %68 = vmatpush.msra.mxu0 %v49
    %69 = vmatpush.msra.mxu0 %v48
    %70 = vmatpush.msra.mxu0 %v47
    %71 = vmatpush.msra.mxu0 %v46
    %72 = vmatpush.msra.mxu0 %v45
    %73 = vmatpush.msra.mxu0 %v44
    %74 = vmatpush.msra.mxu0 %v43
    %75 = vmatmul.f32.gmra.mxu0 %v42
    %v76 = vpop.f32.mrf.mxu0
    %v77 = vadd.f32 0.0, %v76
    %78 = vdwg.mxu0
    %v79 = vlaneseq
    %v80 = vand.u32 %v79, 127
    %vm81 = vcmp.ge.s32.totalorder %v80, 4
    %vm82 = vcmp.lt.s32.totalorder %v80, 12
    %vm83 = vmand %vm81, %vm82
    %v84 = vsel %vm83, %v77, -inf
    %85 = vmax.xlane.f32.xlu0 %v84
    %v86 = vpop.xlane.xlu0 %85
    %v87 = vsub.f32 %v84, %v86
    %v88 = vmul.f32 %v87, 1.442695
    %v89 = vpow.pop %v88
    %90 = vadd.xlane.f32.xlu0 %v89
    %v91 = vpop.xlane.xlu0 %90
    %v92 = vrcp.pop %v91
    %v93 = vmul.f32 %v91, %v92
    %v94 = vsub.f32 1.0, %v93
    %v95 = vmul.f32 %v92, %v94
    %v96 = vadd.f32 %v92, %v95
    %vm97 = vweird.f32 %v91
    %vm98 = vweird.f32 %v92
    %vm99 = vmor %vm97, %vm98
    %v100 = vsel %vm99, %v92, %v96
    %v101 = vand.u32 2147483647, %v91
    %vm102 = vcmp.eq.f32.partialorder %v101, 8.507059e+37
    %v103 = vand.u32 %v91, 2147483648
    %v104 = vor.u32 1.1754944e-38, %v103
    %v105 = vsel %vm102, %v104, %v100
    %v106 = vmul.f32 %v89, %v105
    %v107 = vsel %vm83, %v106, %v77
    %108 = vst [vmem:[#allocation7] sm:$0xff] %v107
    // Predicated region
    $region18: #{tpu_custom_call.1} parent=1 // pred_check
      _
    $region19: #{tpu_custom_call.1} parent=1 // pred_check_branch
      %110 = sbr.rel (0) target = $region21
    $region20: #{tpu_custom_call.1} parent=1 // pred_region
      %112 = vsyncadd [#allocation4], 0
      %s114 = sshll.u32 [#allocation7], 4
      %s115 = int_to_ptr.vmem [resolvable:$true] %s114
      %s116 = sshll.u32 %s2, 4
      %s117 = int_to_ptr.hbm [resolvable:$true] %s116
      %119 = dma.vmem_to_hbm [thread:$0]  %s115, 128, %s117, [#allocation4]
    $region21: #{tpu_custom_call.1} parent=1 // pred_fallthru
      _
    // Predicated region
    $region22: #{tpu_custom_call.1} parent=1 // pred_check
      _
    $region23: #{tpu_custom_call.1} parent=1 // pred_check_branch
      %121 = sbr.rel (0) target = $region25
    $region24: #{tpu_custom_call.1} parent=1 // pred_region
      %123 = dma.done [#allocation4], 128
    $region25: #{tpu_custom_call.1} parent=1 // pred_fallthru
      _
    %124 = vsyncpa [#allocation3], 1
    %125 = vsyncpa [#allocation6], 1
    %126 = vsyncpa [#allocation4], 1

</llo_original>
